<compile_context>
chip_gen: v6e
topology: v6e:2x2x1
jax: 0.10.0
libtpu: 0.0.40
codegen_flags: <defaults>
</compile_context>

<pallas_src>
import functools

import jax
import jax.numpy as jnp
from jax import lax
from jax.experimental import pallas as pl
from jax.experimental.pallas import tpu as pltpu

CONFIDENCE_MARGIN = 5.0
ALPHA = 0.5
REF_LEN = 5000                      # torch.randn(1, 5000)
_LANES = 128
_TARGET_TILE_BYTES = 4 * 1024 * 1024    # ~4 MiB per input tile


def _cdiv(a, b):
    return (a + b - 1) // b


def _round_up(v, m):
    return _cdiv(v, m) * m


# ---------------------------------------------------------------------------
# Fused kernel: streaming SSE accumulation + (once per split) deviation loss.
# ---------------------------------------------------------------------------
def _fused_kernel(ref_ref, yp_ref, yt_ref, x_ref, xr_ref, sse_ref, cls_ref,
                  *, n_rows, tile_n, tiles_per_split):
    i = pl.program_id(0)          # split over TensorCores ("parallel")
    j = pl.program_id(1)          # tile within split ("arbitrary" / reduction)

    # ---- streaming SSE over x / x_rec tiles (HBM-bandwidth bound) --------
    @pl.when(j == 0)
    def _init():
        sse_ref[...] = jnp.zeros(sse_ref.shape, jnp.float32)

    tm, d = x_ref.shape
    g = i * tiles_per_split + j                        # unclamped global tile
    row_ids = g * tile_n + lax.broadcasted_iota(jnp.int32, (tm, d), 0)
    diff = x_ref[...].astype(jnp.float32) - xr_ref[...].astype(jnp.float32)
    diff = jnp.where(row_ids < n_rows, diff, 0.0)      # tail/duplicate mask
    sse_ref[...] += jnp.sum(diff * diff)               # splat-accumulate

    # ---- tiny deviation / classification loss (once per split) -----------
    @pl.when(j == 0)
    def _cls():
        ref = ref_ref[...].astype(jnp.float32)         # (40, 128), zero padded
        rr, rc = ref.shape
        rflat = (lax.broadcasted_iota(jnp.int32, (rr, rc), 0) * rc
                 + lax.broadcasted_iota(jnp.int32, (rr, rc), 1))
        # Two-pass mean / unbiased variance (matches torch.mean / torch.std).
        mean_r = jnp.sum(ref) * (1.0 / REF_LEN)        # pads are exactly zero
        centered = jnp.where(rflat < REF_LEN, ref - mean_r, 0.0)
        var_r = jnp.sum(centered * centered) * (1.0 / (REF_LEN - 1))
        inv_std = lax.rsqrt(var_r)                     # EUP; no per-elem divide

        yp = yp_ref[...].astype(jnp.float32)           # sublane+lane dense
        yt = yt_ref[...].astype(jnp.float32)
        sr, sc = yp.shape
        sflat = (lax.broadcasted_iota(jnp.int32, (sr, sc), 0) * sc
                 + lax.broadcasted_iota(jnp.int32, (sr, sc), 1))
        dev = (yp - mean_r) * inv_std
        inlier = jnp.abs(dev)
        outlier = jnp.maximum(CONFIDENCE_MARGIN - dev, 0.0)   # abs() redundant
        cls = (1.0 - yt) * inlier + yt * outlier
        cls = jnp.where(sflat < n_rows, cls, 0.0)
        cls_ref[...] = jnp.sum(cls) + jnp.zeros(cls_ref.shape, jnp.float32)


def _choose_tiling(n, d, itemsize, target_tile_bytes):
    """Returns (tile_n, num_real_tiles, n_splits, tiles_per_split)."""
    if n < 16:
        return n, 1, 1, 1                              # single full-dim tile
    rows_target = max(8, (target_tile_bytes // max(1, d * itemsize)) // 8 * 8)
    tile_n = min(rows_target, _round_up(n, 8))
    num_real = _cdiv(n, tile_n)
    if num_real == 1:
        # Split into (at least) two row-tiles so both v7x TensorCores stream.
        tile_n = _round_up(_cdiv(n, 2), 8)
        num_real = _cdiv(n, tile_n)
    n_splits = 2 if num_real >= 2 else 1
    tiles_per_split = _cdiv(num_real, n_splits)
    return tile_n, num_real, n_splits, tiles_per_split


def meta_loss(x, x_rec, y_pred, y_true, ref, *,
              target_tile_bytes=_TARGET_TILE_BYTES):
    """Pallas implementation of MetaLoss.forward. Returns shape (1,) f32."""
    n, d = x.shape
    assert x_rec.shape == (n, d)
    assert y_pred.shape == (n, 1) and y_true.shape == (n, 1)
    assert ref.shape == (1, REF_LEN)

    itemsize = jnp.dtype(x.dtype).itemsize
    tile_n, num_real, n_splits, tiles_per_split = _choose_tiling(
        n, d, itemsize, target_tile_bytes)

    # Small side inputs, repacked sublane/lane dense (zero padded + masked).
    ref_rows = _cdiv(REF_LEN, _LANES)                                  # 40
    ref_packed = jnp.pad(ref.reshape(-1).astype(jnp.float32),
                         (0, ref_rows * _LANES - REF_LEN)
                         ).reshape(ref_rows, _LANES)
    score_rows = _round_up(_cdiv(n, _LANES), 8)
    pad_s = score_rows * _LANES - n
    yp_packed = jnp.pad(y_pred.reshape(-1).astype(jnp.float32),
                        (0, pad_s)).reshape(score_rows, _LANES)
    yt_packed = jnp.pad(y_true.reshape(-1).astype(jnp.float32),
                        (0, pad_s)).reshape(score_rows, _LANES)

    def const_spec(arr):
        return pl.BlockSpec(arr.shape, lambda i, j: (0, 0))

    if n_splits * tiles_per_split == num_real:
        def tile_map(i, j):
            return (i * tiles_per_split + j, 0)
    else:
        # Odd tile count: the last split has one extra grid step; clamp its
        # tile index onto a valid tile (the kernel masks those rows to 0).
        def tile_map(i, j):
            g = i * tiles_per_split + j
            return (jnp.minimum(g, num_real - 1), 0)

    kernel = functools.partial(_fused_kernel, n_rows=n, tile_n=tile_n,
                               tiles_per_split=tiles_per_split)

    cost = pl.CostEstimate(
        flops=int(3 * n * d + 8 * n + 3 * REF_LEN),
        transcendentals=1,
        bytes_accessed=int(2 * n * d * itemsize + REF_LEN * 4 + 2 * n * 4))

    sse_out, cls_out = pl.pallas_call(
        kernel,
        grid=(n_splits, tiles_per_split),
        in_specs=[const_spec(ref_packed),
                  const_spec(yp_packed),
                  const_spec(yt_packed),
                  pl.BlockSpec((tile_n, d), tile_map),
                  pl.BlockSpec((tile_n, d), tile_map)],
        out_specs=[pl.BlockSpec((8, _LANES), lambda i, j: (i, 0)),
                   pl.BlockSpec((8, _LANES), lambda i, j: (i, 0))],
        out_shape=[jax.ShapeDtypeStruct((n_splits * 8, _LANES), jnp.float32),
                   jax.ShapeDtypeStruct((n_splits * 8, _LANES), jnp.float32)],
        compiler_params=pltpu.CompilerParams(
            dimension_semantics=("parallel", "arbitrary"),
            vmem_limit_bytes=32 * 1024 * 1024),
        cost_estimate=cost,
    )(ref_packed, yp_packed, yt_packed, x, x_rec)

    ae_loss = jnp.sum(sse_out[::8, 0]) * (1.0 / (n * d))  # MSE over true N*D
    cls_sum = cls_out[0, 0]
    loss = ALPHA * ae_loss + (1.0 - ALPHA) * cls_sum
    return jnp.reshape(loss, (1,))


def meta_loss_reference(x, x_rec, y_pred, y_true, ref):
    """Plain-JAX reference mirroring the PyTorch forward."""
    x = x.astype(jnp.float32)
    x_rec = x_rec.astype(jnp.float32)
    mean_r = jnp.mean(ref, axis=1)
    std_r = jnp.std(ref, axis=1, ddof=1)
    dev = (y_pred - mean_r) / std_r
    inlier = jnp.abs(dev)
    outlier = jnp.abs(jnp.maximum(CONFIDENCE_MARGIN - dev, 0.0))
    cls = (1.0 - y_true) * inlier + y_true * outlier
    cls = jnp.sum(cls, axis=0)
    ae = jnp.mean((x - x_rec) ** 2)
    return ALPHA * ae + (1.0 - ALPHA) * cls


if __name__ == "__main__":
    key = jax.random.PRNGKey(0)
    k_ref, k_x, k_rec, k_pred, k_true = jax.random.split(key, 5)

    # Deterministic stand-in for torch.randn(1, 5000).cuda()
    ref = jax.random.normal(k_ref, (1, REF_LEN), dtype=jnp.float32)

    def check(x, x_rec, y_pred, y_true, **kw):
        loss = meta_loss(x, x_rec, y_pred, y_true, ref, **kw)
        jax.block_until_ready(loss)
        loss_ref = meta_loss_reference(x, x_rec, y_pred, y_true, ref)
        assert loss.shape == (1,)
        assert jnp.allclose(loss, loss_ref, rtol=1e-5, atol=1e-5), (loss, loss_ref)

    # --- test 1: tiny shapes, single tile / single split -------------------
    N, D = 8, 32
    x = jax.random.normal(k_x, (N, D), dtype=jnp.float32)
    x_rec = x + 0.1 * jax.random.normal(k_rec, (N, D), dtype=jnp.float32)
    y_pred = jax.random.normal(k_pred, (N, 1), dtype=jnp.float32)
    y_true = (jax.random.uniform(k_true, (N, 1)) > 0.5).astype(jnp.float32)
    check(x, x_rec, y_pred, y_true)

    # --- test 2: N % tile != 0, two-split grid, partial tail tile ----------
    N2, D2 = 200, 96
    k2 = jax.random.split(key, 4)
    x2 = jax.random.normal(k2[0], (N2, D2), dtype=jnp.float32)
    x2_rec = x2 + 0.1 * jax.random.normal(k2[1], (N2, D2), dtype=jnp.float32)
    y2_pred = jax.random.normal(k2[2], (N2, 1), dtype=jnp.float32)
    y2_true = (jax.random.uniform(k2[3], (N2, 1)) > 0.5).astype(jnp.float32)
    check(x2, x2_rec, y2_pred, y2_true)

    # --- test 3: many tiny tiles -> odd tile count, clamped index_map ------
    check(x2, x2_rec, y2_pred, y2_true, target_tile_bytes=8 * D2 * 4)

    # --- test 4: bf16 reconstruction inputs pass straight through ----------
    check(x2.astype(jnp.bfloat16), x2_rec.astype(jnp.bfloat16),
          y2_pred, y2_true)

    print("KERNEL_OK")
</pallas_src>

<mosaic_0001>
module attributes {stable_mosaic.version = 11 : i64} {
  func.func @_fused_kernel(%arg0: i32, %arg1: i32, %arg2: memref<40x128xf32, #tpu.memory_space<vmem>>, %arg3: memref<8x128xf32, #tpu.memory_space<vmem>>, %arg4: memref<8x128xf32, #tpu.memory_space<vmem>>, %arg5: memref<8x32xf32, #tpu.memory_space<vmem>>, %arg6: memref<8x32xf32, #tpu.memory_space<vmem>>, %arg7: memref<8x128xf32, #tpu.memory_space<vmem>>, %arg8: memref<8x128xf32, #tpu.memory_space<vmem>>) attributes {dimension_semantics = [#tpu.dimension_semantics<parallel>, #tpu.dimension_semantics<arbitrary>], iteration_bounds = array<i64: 1, 1>, scalar_prefetch = 0 : i64, scratch_operands = 0 : i64, tpu.core_type = #tpu.core_type<tc>, window_params = [{pipeline_mode = #tpu.pipeline_mode<synchronous>, transform_indices = @transform_0, window_bounds = array<i64: 40, 128>}, {pipeline_mode = #tpu.pipeline_mode<synchronous>, transform_indices = @transform_1, window_bounds = array<i64: 8, 128>}, {pipeline_mode = #tpu.pipeline_mode<synchronous>, transform_indices = @transform_2, window_bounds = array<i64: 8, 128>}, {transform_indices = @transform_3, window_bounds = array<i64: 8, 32>}, {transform_indices = @transform_4, window_bounds = array<i64: 8, 32>}, {transform_indices = @transform_5, window_bounds = array<i64: 8, 128>}, {transform_indices = @transform_6, window_bounds = array<i64: 8, 128>}]} {
    %c0_i32 = arith.constant 0 : i32
    %0 = arith.cmpi eq, %arg1, %c0_i32 : i32
    %1 = arith.extui %0 : i1 to i32
    %c0_i32_0 = arith.constant 0 : i32
    %2 = arith.cmpi ne, %1, %c0_i32_0 : i32
    scf.if %2 {
      %cst_12 = arith.constant 0.000000e+00 : f32
      %28 = vector.broadcast %cst_12 : f32 to vector<8x128xf32>
      %c0_13 = arith.constant 0 : index
      %c0_14 = arith.constant 0 : index
      %29 = vector.load %arg7[%c0_13, %c0_14] : memref<8x128xf32, #tpu.memory_space<vmem>>, vector<8x128xf32>
      tpu.vector_store %arg7[%c0_13, %c0_14], %28 {strides = array<i32>} : memref<8x128xf32, #tpu.memory_space<vmem>>, vector<8x128xf32>,
    } else {
    }
    %c1_i32 = arith.constant 1 : i32
    %3 = arith.muli %arg0, %c1_i32 : i32
    %4 = arith.addi %3, %arg1 : i32
    %c8_i32 = arith.constant 8 : i32
    %5 = arith.muli %4, %c8_i32 : i32
    %6 = tpu.iota {dimensions = array<i32: 0>} : vector<8x32xi32>
    %7 = vector.broadcast %5 : i32 to vector<8x32xi32>
    %8 = arith.addi %7, %6 : vector<8x32xi32>
    %c0 = arith.constant 0 : index
    %c0_1 = arith.constant 0 : index
    %9 = vector.load %arg5[%c0, %c0_1] : memref<8x32xf32, #tpu.memory_space<vmem>>, vector<8x32xf32>
    %c0_2 = arith.constant 0 : index
    %c0_3 = arith.constant 0 : index
    %10 = vector.load %arg6[%c0_2, %c0_3] : memref<8x32xf32, #tpu.memory_space<vmem>>, vector<8x32xf32>
    %11 = arith.subf %9, %10 : vector<8x32xf32>
    %c8_i32_4 = arith.constant 8 : i32
    %12 = vector.broadcast %c8_i32_4 : i32 to vector<8x32xi32>
    %13 = arith.cmpi slt, %8, %12 : vector<8x32xi32>
    %cst = arith.constant 0.000000e+00 : f32
    %14 = vector.broadcast %cst : f32 to vector<8x32xf32>
    %15 = arith.select %13, %11, %14 : vector<8x32xi1>, vector<8x32xf32>
    %c0_5 = arith.constant 0 : index
    %c0_6 = arith.constant 0 : index
    %16 = vector.load %arg7[%c0_5, %c0_6] : memref<8x128xf32, #tpu.memory_space<vmem>>, vector<8x128xf32>
    %17 = arith.mulf %15, %15 : vector<8x32xf32>
    %18 = vector.shape_cast %17 : vector<8x32xf32> to vector<1x8x32xf32>
    %cst_7 = arith.constant dense<0.000000e+00> : vector<1xf32>
    %19 = vector.multi_reduction <add>, %18, %cst_7 [1, 2] : vector<1x8x32xf32> to vector<1xf32>
    %20 = vector.shape_cast %19 : vector<1xf32> to vector<1x1x1xf32>
    %21 = vector.extract %20[0, 0, 0] : f32 from vector<1x1x1xf32>
    %22 = vector.broadcast %21 : f32 to vector<8x128xf32>
    %23 = arith.addf %16, %22 : vector<8x128xf32>
    %c0_8 = arith.constant 0 : index
    %c0_9 = arith.constant 0 : index
    %24 = vector.load %arg7[%c0_8, %c0_9] : memref<8x128xf32, #tpu.memory_space<vmem>>, vector<8x128xf32>
    tpu.vector_store %arg7[%c0_8, %c0_9], %23 {strides = array<i32>} : memref<8x128xf32, #tpu.memory_space<vmem>>, vector<8x128xf32>,
    %c0_i32_10 = arith.constant 0 : i32
    %25 = arith.cmpi eq, %arg1, %c0_i32_10 : i32
    %26 = arith.extui %25 : i1 to i32
    %c0_i32_11 = arith.constant 0 : i32
    %27 = arith.cmpi ne, %26, %c0_i32_11 : i32
    scf.if %27 {
      %c0_12 = arith.constant 0 : index
      %c0_13 = arith.constant 0 : index
      %28 = vector.load %arg2[%c0_12, %c0_13] : memref<40x128xf32, #tpu.memory_space<vmem>>, vector<40x128xf32>
      %29 = tpu.iota {dimensions = array<i32: 0>} : vector<40x128xi32>
      %c128_i32 = arith.constant 128 : i32
      %30 = vector.broadcast %c128_i32 : i32 to vector<40x128xi32>
      %31 = arith.muli %29, %30 : vector<40x128xi32>
      %32 = tpu.iota {dimensions = array<i32: 1>} : vector<40x128xi32>
      %33 = arith.addi %31, %32 : vector<40x128xi32>
      %34 = vector.shape_cast %28 : vector<40x128xf32> to vector<1x40x128xf32>
      %cst_14 = arith.constant dense<0.000000e+00> : vector<1xf32>
      %35 = vector.multi_reduction <add>, %34, %cst_14 [1, 2] : vector<1x40x128xf32> to vector<1xf32>
      %36 = vector.shape_cast %35 : vector<1xf32> to vector<1x1x1xf32>
      %37 = vector.extract %36[0, 0, 0] : f32 from vector<1x1x1xf32>
      %cst_15 = arith.constant 2.000000e-04 : f32
      %38 = arith.mulf %37, %cst_15 : f32
      %c5000_i32 = arith.constant 5000 : i32
      %39 = vector.broadcast %c5000_i32 : i32 to vector<40x128xi32>
      %40 = arith.cmpi slt, %33, %39 : vector<40x128xi32>
      %41 = vector.broadcast %38 : f32 to vector<40x128xf32>
      %42 = arith.subf %28, %41 : vector<40x128xf32>
      %cst_16 = arith.constant 0.000000e+00 : f32
      %43 = vector.broadcast %cst_16 : f32 to vector<40x128xf32>
      %44 = arith.select %40, %42, %43 : vector<40x128xi1>, vector<40x128xf32>
      %45 = arith.mulf %44, %44 : vector<40x128xf32>
      %46 = vector.shape_cast %45 : vector<40x128xf32> to vector<1x40x128xf32>
      %cst_17 = arith.constant dense<0.000000e+00> : vector<1xf32>
      %47 = vector.multi_reduction <add>, %46, %cst_17 [1, 2] : vector<1x40x128xf32> to vector<1xf32>
      %48 = vector.shape_cast %47 : vector<1xf32> to vector<1x1x1xf32>
      %49 = vector.extract %48[0, 0, 0] : f32 from vector<1x1x1xf32>
      %cst_18 = arith.constant 2.00040013E-4 : f32
      %50 = arith.mulf %49, %cst_18 : f32
      %51 = math.rsqrt %50 : f32
      %c0_19 = arith.constant 0 : index
      %c0_20 = arith.constant 0 : index
      %52 = vector.load %arg3[%c0_19, %c0_20] : memref<8x128xf32, #tpu.memory_space<vmem>>, vector<8x128xf32>
      %c0_21 = arith.constant 0 : index
      %c0_22 = arith.constant 0 : index
      %53 = vector.load %arg4[%c0_21, %c0_22] : memref<8x128xf32, #tpu.memory_space<vmem>>, vector<8x128xf32>
      %54 = tpu.iota {dimensions = array<i32: 0>} : vector<8x128xi32>
      %c128_i32_23 = arith.constant 128 : i32
      %55 = vector.broadcast %c128_i32_23 : i32 to vector<8x128xi32>
      %56 = arith.muli %54, %55 : vector<8x128xi32>
      %57 = tpu.iota {dimensions = array<i32: 1>} : vector<8x128xi32>
      %58 = arith.addi %56, %57 : vector<8x128xi32>
      %59 = vector.broadcast %38 : f32 to vector<8x128xf32>
      %60 = arith.subf %52, %59 : vector<8x128xf32>
      %61 = vector.broadcast %51 : f32 to vector<8x128xf32>
      %62 = arith.mulf %60, %61 : vector<8x128xf32>
      %63 = math.absf %62 : vector<8x128xf32>
      %cst_24 = arith.constant 5.000000e+00 : f32
      %64 = vector.broadcast %cst_24 : f32 to vector<8x128xf32>
      %65 = arith.subf %64, %62 : vector<8x128xf32>
      %cst_25 = arith.constant 0.000000e+00 : f32
      %66 = vector.broadcast %cst_25 : f32 to vector<8x128xf32>
      %67 = arith.maximumf %65, %66 : vector<8x128xf32>
      %cst_26 = arith.constant 1.000000e+00 : f32
      %68 = vector.broadcast %cst_26 : f32 to vector<8x128xf32>
      %69 = arith.subf %68, %53 : vector<8x128xf32>
      %70 = arith.mulf %69, %63 : vector<8x128xf32>
      %71 = arith.mulf %53, %67 : vector<8x128xf32>
      %72 = arith.addf %70, %71 : vector<8x128xf32>
      %c8_i32_27 = arith.constant 8 : i32
      %73 = vector.broadcast %c8_i32_27 : i32 to vector<8x128xi32>
      %74 = arith.cmpi slt, %58, %73 : vector<8x128xi32>
      %cst_28 = arith.constant 0.000000e+00 : f32
      %75 = vector.broadcast %cst_28 : f32 to vector<8x128xf32>
      %76 = arith.select %74, %72, %75 : vector<8x128xi1>, vector<8x128xf32>
      %77 = vector.shape_cast %76 : vector<8x128xf32> to vector<1x8x128xf32>
      %cst_29 = arith.constant dense<0.000000e+00> : vector<1xf32>
      %78 = vector.multi_reduction <add>, %77, %cst_29 [1, 2] : vector<1x8x128xf32> to vector<1xf32>
      %79 = vector.shape_cast %78 : vector<1xf32> to vector<1x1x1xf32>
      %80 = vector.extract %79[0, 0, 0] : f32 from vector<1x1x1xf32>
      %cst_30 = arith.constant 0.000000e+00 : f32
      %81 = vector.broadcast %cst_30 : f32 to vector<8x128xf32>
      %82 = vector.broadcast %80 : f32 to vector<8x128xf32>
      %83 = arith.addf %82, %81 : vector<8x128xf32>
      %c0_31 = arith.constant 0 : index
      %c0_32 = arith.constant 0 : index
      %84 = vector.load %arg8[%c0_31, %c0_32] : memref<8x128xf32, #tpu.memory_space<vmem>>, vector<8x128xf32>
      tpu.vector_store %arg8[%c0_31, %c0_32], %83 {strides = array<i32>} : memref<8x128xf32, #tpu.memory_space<vmem>>, vector<8x128xf32>,
    } else {
    }
    return
  }
  func.func @transform_0(%arg0: i32, %arg1: i32) -> (i32, i32) {
    %c0_i32 = arith.constant 0 : i32
    %c0_i32_0 = arith.constant 0 : i32
    %c0_i32_1 = arith.constant 0 : i32
    return %c0_i32, %c0_i32_0 : i32, i32
  }
  func.func @transform_1(%arg0: i32, %arg1: i32) -> (i32, i32) {
    %c0_i32 = arith.constant 0 : i32
    %c0_i32_0 = arith.constant 0 : i32
    %c0_i32_1 = arith.constant 0 : i32
    return %c0_i32, %c0_i32_0 : i32, i32
  }
  func.func @transform_2(%arg0: i32, %arg1: i32) -> (i32, i32) {
    %c0_i32 = arith.constant 0 : i32
    %c0_i32_0 = arith.constant 0 : i32
    %c0_i32_1 = arith.constant 0 : i32
    return %c0_i32, %c0_i32_0 : i32, i32
  }
  func.func @transform_3(%arg0: i32, %arg1: i32) -> (i32, i32) {
    %c1_i32 = arith.constant 1 : i32
    %0 = arith.muli %arg0, %c1_i32 : i32
    %1 = arith.addi %0, %arg1 : i32
    %c0_i32 = arith.constant 0 : i32
    %c0_i32_0 = arith.constant 0 : i32
    return %1, %c0_i32 : i32, i32
  }
  func.func @transform_4(%arg0: i32, %arg1: i32) -> (i32, i32) {
    %c1_i32 = arith.constant 1 : i32
    %0 = arith.muli %arg0, %c1_i32 : i32
    %1 = arith.addi %0, %arg1 : i32
    %c0_i32 = arith.constant 0 : i32
    %c0_i32_0 = arith.constant 0 : i32
    return %1, %c0_i32 : i32, i32
  }
  func.func @transform_5(%arg0: i32, %arg1: i32) -> (i32, i32) {
    %c0_i32 = arith.constant 0 : i32
    %c0_i32_0 = arith.constant 0 : i32
    return %arg0, %c0_i32 : i32, i32
  }
  func.func @transform_6(%arg0: i32, %arg1: i32) -> (i32, i32) {
    %c0_i32 = arith.constant 0 : i32
    %c0_i32_0 = arith.constant 0 : i32
    return %arg0, %c0_i32 : i32, i32
  }
}

</mosaic_0001>

<llo_original>
// kernel: tpu_custom_call.1
$region0: #{tpu_custom_call.1}
  #allocation0 [shape = 'u32[]', space=smem, size = 0x4, offset = 0x4, fixed_abs, tag = 'smem constant byte address 0x4 - core index']
  #allocation1 [shape = 'u32[144,128]{1,0:T(1,128)}', space=vmem, size = 0x12000, scoped, tag = 'internal scratch']
  %s0 = inlined_call_operand.hbm [shape: f32[40,128], index: 0, kind: input, shape index: {}]
  %s1 = inlined_call_operand.hbm [shape: f32[8,128], index: 1, kind: input, shape index: {}]
  %s2 = inlined_call_operand.hbm [shape: f32[8,128], index: 2, kind: input, shape index: {}]
  %s3 = inlined_call_operand.hbm [shape: f32[8,32], index: 3, kind: input, shape index: {}]
  %s4 = inlined_call_operand.hbm [shape: f32[8,32], index: 4, kind: input, shape index: {}]
  %s5 = inlined_call_operand.hbm [shape: f32[8,128], index: 5, kind: output, shape index: {0}]
  %s6 = inlined_call_operand.hbm [shape: f32[8,128], index: 6, kind: output, shape index: {1}]
  %7 = xla_tuple %s5, %s6
  %s8 = sld [smem:[#allocation0]]
  $region66: #{tpu_custom_call.1} parent=0
    _
  %s10 = ssub.s32 1, %s8
  %s11 = scalar_select 0, %s10, %s8
  $region1: #{tpu_custom_call.1} parent=0
    #allocation2 [shape = 'u8[20480]{0}', space=vmem, size = 0x5000, scoped, tag = 'input window, operand 0, single buffered']
    #allocation3 [shape = 's32[1]{0}', space=sflag, size = 0x4, scoped, tag = 'scoped memory for tpu_custom_call.1']
    #allocation4 [shape = 's32[1]{0}', space=sflag, size = 0x4, scoped, tag = 'scoped memory for tpu_custom_call.1']
    #allocation5 [shape = 'u8[4096]{0}', space=vmem, size = 0x1000, scoped, tag = 'input window, operand 1, single buffered']
    #allocation6 [shape = 's32[1]{0}', space=sflag, size = 0x4, scoped, tag = 'scoped memory for tpu_custom_call.1']
    #allocation7 [shape = 'u8[4096]{0}', space=vmem, size = 0x1000, scoped, tag = 'input window, operand 2, single buffered']
    #allocation8 [shape = 'u8[4096]{0}', space=vmem, size = 0x1000, scoped, tag = 'input window, operand 3, single buffered']
    #allocation9 [shape = 's32[1]{0}', space=sflag, size = 0x4, scoped, tag = 'scoped memory for tpu_custom_call.1']
    #allocation10 [shape = 'u8[4096]{0}', space=vmem, size = 0x1000, scoped, tag = 'input window, operand 4, single buffered']
    #allocation11 [shape = 'u8[4096]{0}', space=vmem, size = 0x1000, scoped, tag = 'output window, operand 0, single buffered']
    #allocation12 [shape = 'u8[4096]{0}', space=vmem, size = 0x1000, scoped, tag = 'output window, operand 1, single buffered']
    #allocation13 [shape = 's32[1]{0}', space=sflag, size = 0x4, scoped, tag = 'scoped memory for tpu_custom_call.1']
    %12 = vsyncpa [#allocation3], 0
    %13 = vsyncpa [#allocation6], 0
    %14 = vsyncpa [#allocation9], 0
    %15 = vsyncpa [#allocation4], 0
    %16 = vsyncpa [#allocation13], 0
    // Predicated region
    $region2: #{tpu_custom_call.1} parent=1 // pred_check
      _
    $region3: #{tpu_custom_call.1} parent=1 // pred_check_branch
      %18 = sbr.rel (0) target = $region5
    $region4: #{tpu_custom_call.1} parent=1 // pred_region
      %s20 = ssub.s32 640, 640
      %21 = vsyncadd [#allocation3], %s20
      %s22 = sshll.u32 [#allocation2], 4
      %s23 = int_to_ptr.vmem [resolvable:$true] %s22
      %28 = dma.hbm_to_vmem [thread:$0]  %s0, 640, %s23, [#allocation3], 128, 128, 8
    $region5: #{tpu_custom_call.1} parent=1 // pred_fallthru
      _
    // Predicated region
    $region6: #{tpu_custom_call.1} parent=1 // pred_check
      _
    $region7: #{tpu_custom_call.1} parent=1 // pred_check_branch
      %30 = sbr.rel (0) target = $region9
    $region8: #{tpu_custom_call.1} parent=1 // pred_region
      %s32 = ssub.s32 128, 128
      %33 = vsyncadd [#allocation6], %s32
      %s35 = sshll.u32 [#allocation5], 4
      %s36 = int_to_ptr.vmem [resolvable:$true] %s35
      %38 = dma.hbm_to_vmem [thread:$0]  %s1, 128, %s36, [#allocation6]
    $region9: #{tpu_custom_call.1} parent=1 // pred_fallthru
      _
    // Predicated region
    $region10: #{tpu_custom_call.1} parent=1 // pred_check
      _
    $region11: #{tpu_custom_call.1} parent=1 // pred_check_branch
      %40 = sbr.rel (0) target = $region13
    $region12: #{tpu_custom_call.1} parent=1 // pred_region
      %s42 = ssub.s32 128, 128
      %43 = vsyncadd [#allocation6], %s42
      %s45 = sshll.u32 [#allocation7], 4
      %s46 = int_to_ptr.vmem [resolvable:$true] %s45
      %48 = dma.hbm_to_vmem [thread:$0]  %s2, 128, %s46, [#allocation6]
    $region13: #{tpu_custom_call.1} parent=1 // pred_fallthru
      _
    // Predicated region
    $region14: #{tpu_custom_call.1} parent=1 // pred_check
      _
    $region15: #{tpu_custom_call.1} parent=1 // pred_check_branch
      %50 = sbr.rel (0) target = $region17
    $region16: #{tpu_custom_call.1} parent=1 // pred_region
      %s51 = sadd.s32 0, 0
      %s53 = ssub.s32 128, 128
      %54 = vsyncadd [#allocation9], %s53
      %s55 = smul.addr %s51, 128
      %s56 = scalar_lea.hbm %s3, %s55
      %s58 = sshll.u32 [#allocation8], 4
      %s59 = int_to_ptr.vmem [resolvable:$true] %s58
      %61 = dma.hbm_to_vmem [thread:$0]  %s56, 128, %s59, [#allocation9]
    $region17: #{tpu_custom_call.1} parent=1 // pred_fallthru
      _
    // Predicated region
    $region18: #{tpu_custom_call.1} parent=1 // pred_check
      _
    $region19: #{tpu_custom_call.1} parent=1 // pred_check_branch
      %63 = sbr.rel (0) target = $region21
    $region20: #{tpu_custom_call.1} parent=1 // pred_region
      %s64 = sadd.s32 0, 0
      %s66 = ssub.s32 128, 128
      %67 = vsyncadd [#allocation9], %s66
      %s68 = smul.addr %s64, 128
      %s69 = scalar_lea.hbm %s4, %s68
      %s71 = sshll.u32 [#allocation10], 4
      %s72 = int_to_ptr.vmem [resolvable:$true] %s71
      %74 = dma.hbm_to_vmem [thread:$0]  %s69, 128, %s72, [#allocation9]
    $region21: #{tpu_custom_call.1} parent=1 // pred_fallthru
      _
    // Predicated region
    $region22: #{tpu_custom_call.1} parent=1 // pred_check
      _
    $region23: #{tpu_custom_call.1} parent=1 // pred_check_branch
      %76 = sbr.rel (0) target = $region25
    $region24: #{tpu_custom_call.1} parent=1 // pred_region
      %77 = dma.done [#allocation3], 640
    $region25: #{tpu_custom_call.1} parent=1 // pred_fallthru
      _
    // Predicated region
    $region26: #{tpu_custom_call.1} parent=1 // pred_check
      _
    $region27: #{tpu_custom_call.1} parent=1 // pred_check_branch
      %79 = sbr.rel (0) target = $region29
    $region28: #{tpu_custom_call.1} parent=1 // pred_region
      %80 = dma.done [#allocation6], 128
    $region29: #{tpu_custom_call.1} parent=1 // pred_fallthru
      _
    // Predicated region
    $region30: #{tpu_custom_call.1} parent=1 // pred_check
      _
    $region31: #{tpu_custom_call.1} parent=1 // pred_check_branch
      %82 = sbr.rel (0) target = $region33
    $region32: #{tpu_custom_call.1} parent=1 // pred_region
      %83 = dma.done [#allocation6], 128
    $region33: #{tpu_custom_call.1} parent=1 // pred_fallthru
      _
    // Predicated region
    $region34: #{tpu_custom_call.1} parent=1 // pred_check
      _
    $region35: #{tpu_custom_call.1} parent=1 // pred_check_branch
      %85 = sbr.rel (0) target = $region37
    $region36: #{tpu_custom_call.1} parent=1 // pred_region
      %86 = dma.done [#allocation9], 128
    $region37: #{tpu_custom_call.1} parent=1 // pred_fallthru
      _
    // Predicated region
    $region38: #{tpu_custom_call.1} parent=1 // pred_check
      _
    $region39: #{tpu_custom_call.1} parent=1 // pred_check_branch
      %88 = sbr.rel (0) target = $region41
    $region40: #{tpu_custom_call.1} parent=1 // pred_region
      %89 = dma.done [#allocation9], 128
    $region41: #{tpu_custom_call.1} parent=1 // pred_fallthru
      _
    %s90 = sadd.s32 0, 0
    %s91 = sadd.s32 0, 0
    %p92 = scmp.eq.s32.totalorder 0, 0
    // Predicated region
    $region42: #{tpu_custom_call.1} parent=1 // pred_check
      %p93 = pneg %p92
    $region43: #{tpu_custom_call.1} parent=1 // pred_check_branch
      %95 = sbr.rel (%p93) target = $region45
    $region44: #{tpu_custom_call.1} parent=1 // pred_region
      %96 = vst [vmem:[#allocation11] sm:$0xff] 0.0
    $region45: #{tpu_custom_call.1} parent=1 // pred_fallthru
      _
    %s97 = sadd.s32 0, 0
    %s98 = smul.u32 %s97, 8
    %v99 = vlaneseq
    %v100 = vshrl.u32 %v99, 7
    %v101 = vstv %s98
    %v102 = vadd.s32 %v101, %v100
    %v103 = vld [vmem:[#allocation8] sm:$0xff]
    %v104 = vld [vmem:[#allocation10] sm:$0xff]
    %v105 = vsub.f32 %v103, %v104
    %vm106 = vcmp.lt.s32.totalorder %v102, 8
    %v107 = vsel %vm106, %v105, 0.0
    %v108 = vld [vmem:[#allocation11] sm:$0xff]
    %v109 = vmul.f32 %v107, %v107
    %vm110 = vcmask 261120
    %v111 = vsel %vm110, %v109, 0.0
    %112 = vadd.xlane.f32.xlu0 %v111
    %v113 = vpop.xlane.xlu0 %112
    %v114 = vrot.slane %v113, 4
    %v115 = vadd.f32 %v113, %v114
    %v116 = vrot.slane %v115, 2
    %v117 = vadd.f32 %v115, %v116
    %v118 = vrot.slane %v117, 1
    %v119 = vadd.f32 %v117, %v118
    %s120 = vtos %v119
    %v121 = vstv %s120
    %v122 = vadd.f32 %v108, %v121
    %123 = vst [vmem:[#allocation11] sm:$0xff] %v122
    // Predicated region
    $region46: #{tpu_custom_call.1} parent=1 // pred_check
      %p124 = pneg %p92
    $region47: #{tpu_custom_call.1} parent=1 // pred_check_branch
      %126 = sbr.rel (%p124) target = $region49
    $region48: #{tpu_custom_call.1} parent=1 // pred_region
      %v127 = vld [vmem:[#allocation2] sm:$0xff]
      %v128 = vld [vmem:[#allocation2 + $0x8] sm:$0xff]
      %v129 = vld [vmem:[#allocation2 + $0x10] sm:$0xff]
      %v130 = vld [vmem:[#allocation2 + $0x18] sm:$0xff]
      %v131 = vld [vmem:[#allocation2 + $0x20] sm:$0xff]
      %v132 = vadd.s32 %v100, 8
      %v133 = vadd.s32 %v100, 16
      %v134 = vadd.s32 %v100, 24
      %v135 = vadd.s32 %v100, 32
      %v136 = vmul.u32 %v100, 128
      %v137 = vmul.u32 %v132, 128
      %v138 = vmul.u32 %v133, 128
      %v139 = vmul.u32 %v134, 128
      %v140 = vmul.u32 %v135, 128
      %v141 = vlaneseq
      %v142 = vand.u32 %v141, 127
      %v143 = vadd.s32 %v136, %v142
      %v144 = vadd.s32 %v137, %v142
      %v145 = vadd.s32 %v138, %v142
      %v146 = vadd.s32 %v139, %v142
      %v147 = vadd.s32 %v140, %v142
      %v148 = vadd.f32 %v127, %v128
      %v149 = vadd.f32 %v148, %v129
      %v150 = vadd.f32 %v149, %v130
      %v151 = vadd.f32 %v150, %v131
      %152 = vadd.xlane.f32.xlu0 %v151
      %v153 = vpop.xlane.xlu0 %152
      %v154 = vrot.slane %v153, 4
      %v155 = vadd.f32 %v153, %v154
      %v156 = vrot.slane %v155, 2
      %v157 = vadd.f32 %v155, %v156
      %v158 = vrot.slane %v157, 1
      %v159 = vadd.f32 %v157, %v158
      %s160 = vtos %v159
      %s161 = smul.f32 %s160, 0.0002
      %vm162 = vcmp.lt.s32.totalorder %v143, 5000
      %vm163 = vcmp.lt.s32.totalorder %v144, 5000
      %vm164 = vcmp.lt.s32.totalorder %v145, 5000
      %vm165 = vcmp.lt.s32.totalorder %v146, 5000
      %vm166 = vcmp.lt.s32.totalorder %v147, 5000
      %v167 = vstv %s161
      %v168 = vsub.f32 %v127, %v167
      %v169 = vsub.f32 %v128, %v167
      %v170 = vsub.f32 %v129, %v167
      %v171 = vsub.f32 %v130, %v167
      %v172 = vsub.f32 %v131, %v167
      %v173 = vsel %vm162, %v168, 0.0
      %v174 = vsel %vm163, %v169, 0.0
      %v175 = vsel %vm164, %v170, 0.0
      %v176 = vsel %vm165, %v171, 0.0
      %v177 = vsel %vm166, %v172, 0.0
      %v178 = vmul.f32 %v173, %v173
      %v179 = vmul.f32 %v174, %v174
      %v180 = vmul.f32 %v175, %v175
      %v181 = vmul.f32 %v176, %v176
      %v182 = vmul.f32 %v177, %v177
      %v183 = vadd.f32 %v178, %v179
      %v184 = vadd.f32 %v183, %v180
      %v185 = vadd.f32 %v184, %v181
      %v186 = vadd.f32 %v185, %v182
      %187 = vadd.xlane.f32.xlu0 %v186
      %v188 = vpop.xlane.xlu0 %187
      %v189 = vrot.slane %v188, 4
      %v190 = vadd.f32 %v188, %v189
      %v191 = vrot.slane %v190, 2
      %v192 = vadd.f32 %v190, %v191
      %v193 = vrot.slane %v192, 1
      %v194 = vadd.f32 %v192, %v193
      %s195 = vtos %v194
      %s196 = smul.f32 %s195, 0.00020004001
      %v197 = vstv %s196
      %v198 = vrsqrt.pop %v197
      %s199 = vtos %v198
      %v200 = vld [vmem:[#allocation5] sm:$0xff]
      %v201 = vld [vmem:[#allocation7] sm:$0xff]
      %v202 = vsub.f32 %v200, %v167
      %v203 = vstv %s199
      %v204 = vmul.f32 %v202, %v203
      %v205 = vand.u32 2147483647, %v204
      %v206 = vsub.f32 5.0, %v204
      %v207 = vmax.f32 %v206, 0.0
      %v208 = vsub.f32 1.0, %v201
      %v209 = vmul.f32 %v208, %v205
      %v210 = vmul.f32 %v201, %v207
      %v211 = vadd.f32 %v209, %v210
      %vm212 = vcmp.lt.s32.totalorder %v143, 8
      %v213 = vsel %vm212, %v211, 0.0
      %214 = vadd.xlane.f32.xlu0 %v213
      %v215 = vpop.xlane.xlu0 %214
      %v216 = vrot.slane %v215, 4
      %v217 = vadd.f32 %v215, %v216
      %v218 = vrot.slane %v217, 2
      %v219 = vadd.f32 %v217, %v218
      %v220 = vrot.slane %v219, 1
      %v221 = vadd.f32 %v219, %v220
      %s222 = vtos %v221
      %v223 = vstv %s222
      %v224 = vadd.f32 %v223, 0.0
      %225 = vst [vmem:[#allocation12] sm:$0xff] %v224
    $region49: #{tpu_custom_call.1} parent=1 // pred_fallthru
      _
    // Predicated region
    $region50: #{tpu_custom_call.1} parent=1 // pred_check
      _
    $region51: #{tpu_custom_call.1} parent=1 // pred_check_branch
      %227 = sbr.rel (0) target = $region53
    $region52: #{tpu_custom_call.1} parent=1 // pred_region
      %s229 = ssub.s32 128, 128
      %230 = vsyncadd [#allocation4], %s229
      %s232 = sshll.u32 [#allocation11], 4
      %s233 = int_to_ptr.vmem [resolvable:$true] %s232
      %235 = dma.vmem_to_hbm [thread:$0]  %s233, 128, %s5, [#allocation4]
    $region53: #{tpu_custom_call.1} parent=1 // pred_fallthru
      _
    // Predicated region
    $region54: #{tpu_custom_call.1} parent=1 // pred_check
      _
    $region55: #{tpu_custom_call.1} parent=1 // pred_check_branch
      %237 = sbr.rel (0) target = $region57
    $region56: #{tpu_custom_call.1} parent=1 // pred_region
      %s239 = ssub.s32 128, 128
      %240 = vsyncadd [#allocation13], %s239
      %s242 = sshll.u32 [#allocation12], 4
      %s243 = int_to_ptr.vmem [resolvable:$true] %s242
      %245 = dma.vmem_to_hbm [thread:$0]  %s243, 128, %s6, [#allocation13]
    $region57: #{tpu_custom_call.1} parent=1 // pred_fallthru
      _
    // Predicated region
    $region58: #{tpu_custom_call.1} parent=1 // pred_check
      _
    $region59: #{tpu_custom_call.1} parent=1 // pred_check_branch
      %247 = sbr.rel (0) target = $region61
    $region60: #{tpu_custom_call.1} parent=1 // pred_region
      %248 = dma.done [#allocation4], 128
    $region61: #{tpu_custom_call.1} parent=1 // pred_fallthru
      _
    // Predicated region
    $region62: #{tpu_custom_call.1} parent=1 // pred_check
      _
    $region63: #{tpu_custom_call.1} parent=1 // pred_check_branch
      %250 = sbr.rel (0) target = $region65
    $region64: #{tpu_custom_call.1} parent=1 // pred_region
      %251 = dma.done [#allocation13], 128
    $region65: #{tpu_custom_call.1} parent=1 // pred_fallthru
      _
    %252 = vsyncpa [#allocation3], 1
    %253 = vsyncpa [#allocation6], 1
    %254 = vsyncpa [#allocation9], 1
    %255 = vsyncpa [#allocation4], 1
    %256 = vsyncpa [#allocation13], 1

</llo_original>
